<compile_context>
chip_gen: v6e
topology: v6e:2x2x1
jax: 0.10.0
libtpu: 0.0.40
codegen_flags: <defaults>
</compile_context>

<pallas_src>
import functools

import jax
import jax.numpy as jnp
from jax.experimental import pallas as pl
from jax.experimental.pallas import tpu as pltpu


LANE = 128
_WEIGHT_VMEM_BUDGET = 24 << 20   # double-buffered weight block budget (v7x-safe)


def _round_up(v, m):
    return (v + m - 1) // m * m


def _batch_pad(b, compute_dtype):
    """Dtype-aware sublane padding: f32 -> 8, bf16 -> 16, int8/fp8 -> 32."""
    pack = max(4 // jnp.dtype(compute_dtype).itemsize, 1)
    return _round_up(b, 8 * pack)


def _choose_k_tiles(k_total, n4h, itemsize, budget_bytes):
    """Smallest K-split (tk a multiple of 128 dividing k_total) such that the
    double-buffered weight block fits the budget."""
    m = k_total // LANE
    for n_k in range(1, m + 1):
        if m % n_k:
            continue
        tk = k_total // n_k
        if 2 * tk * n4h * itemsize <= budget_bytes:
            return n_k, tk
    return m, LANE


# --------------------------------------------------------------------------
# Fused multi-layer kernel: grid = (layer, k_tile).
# --------------------------------------------------------------------------
def _fused_lstm_kernel(x_ref, h_ref, c_ref, w_ref, b_ref,
                       h_out_ref, c_out_ref, xh_ref, gates_ref, *,
                       hidden_pad, d_pad, tile_k):
    """One (layer, K-chunk) per grid step; [x|h] carry lives in xh_ref."""
    layer = pl.program_id(0)
    k = pl.program_id(1)
    n_k = pl.num_programs(1)
    Hp = hidden_pad

    # Layer 0 prologue: load the (zero-padded) sequence input into the carry.
    @pl.when((layer == 0) & (k == 0))
    def _():
        xh_ref[:, :d_pad] = x_ref[...].astype(xh_ref.dtype)

    # Per-layer prologue: this layer's recurrent hidden -> trailing Hp columns.
    @pl.when(k == 0)
    def _():
        xh_ref[:, d_pad:] = h_ref[...].astype(xh_ref.dtype)

    # K-tiled MXU matmul (operands already in the packed weight dtype; f32 acc).
    k_start = pl.multiple_of(k * tile_k, LANE)
    partial = jnp.dot(xh_ref[:, pl.ds(k_start, tile_k)], w_ref[...],
                      preferred_element_type=jnp.float32)

    @pl.when(k == 0)
    def _():
        gates_ref[...] = partial

    @pl.when(k > 0)
    def _():
        gates_ref[...] += partial

    # Epilogue (last K step): nonlinearities, state update, carry hand-off.
    @pl.when(k == n_k - 1)
    def _():
        gates = gates_ref[...] + b_ref[...]
        i_g = jax.nn.sigmoid(gates[:, 0 * Hp:1 * Hp])
        f_g = jax.nn.sigmoid(gates[:, 1 * Hp:2 * Hp])
        g_g = jnp.tanh(gates[:, 2 * Hp:3 * Hp])
        o_g = jax.nn.sigmoid(gates[:, 3 * Hp:4 * Hp])

        c_new = f_g * c_ref[...].astype(jnp.float32) + i_g * g_g
        h_new = o_g * jnp.tanh(c_new)

        h_out_ref[...] = h_new.astype(h_out_ref.dtype)
        c_out_ref[...] = c_new.astype(c_out_ref.dtype)

        # Carry this layer's new hidden as the next layer's input.
        xh_ref[:, :Hp] = h_new.astype(xh_ref.dtype)

    # Clear stale x columns beyond Hp ONCE (after layer 0); later layers only
    # ever write the first Hp columns, so those columns stay zero.
    if d_pad > Hp:  # static
        @pl.when((layer == 0) & (k == n_k - 1))
        def _():
            xh_ref[:, Hp:d_pad] = jnp.zeros(
                (xh_ref.shape[0], d_pad - Hp), xh_ref.dtype)


# --------------------------------------------------------------------------
# Parameter packing: done ONCE (transpose + gate-pad + stack + bias merge).
# --------------------------------------------------------------------------
def prepare_params(params, input_size, hidden_size, weight_dtype=jnp.bfloat16):
    """params: list of (w_ih, w_hh, b_ih, b_hh) per layer (nn.LSTMCell layout).

    Returns:
      w_stack: (L, D_pad + H_pad, 4*H_pad) = stack_l [W_ih^T ; W_hh^T], padded,
               stored in `weight_dtype` (bf16 default -> halves weight DMA).
      b_stack: (L, 1, 4*H_pad) = stack_l (b_ih + b_hh), padded, float32.
    """
    H = hidden_size
    Hp = _round_up(H, LANE)
    Dp = max(_round_up(input_size, LANE), Hp)

    def pad_gate_rows(w):                      # (4H, cols) -> (4*Hp, cols)
        cols = w.shape[1]
        w4 = w.reshape(4, H, cols)
        w4 = jnp.pad(w4, ((0, 0), (0, Hp - H), (0, 0)))
        return w4.reshape(4 * Hp, cols)

    w_blocks, b_blocks = [], []
    for (w_ih, w_hh, b_ih, b_hh) in params:
        in_dim = w_ih.shape[1]
        w_ih_t = jnp.transpose(pad_gate_rows(w_ih))             # (in_dim, 4Hp)
        w_ih_t = jnp.pad(w_ih_t, ((0, Dp - in_dim), (0, 0)))    # (Dp, 4Hp)
        w_hh_t = jnp.transpose(pad_gate_rows(w_hh))             # (H, 4Hp)
        w_hh_t = jnp.pad(w_hh_t, ((0, Hp - H), (0, 0)))         # (Hp, 4Hp)
        w_comb = jnp.concatenate([w_ih_t, w_hh_t], axis=0)      # (Dp+Hp, 4Hp)

        b = (b_ih + b_hh).astype(jnp.float32).reshape(4, H)
        b = jnp.pad(b, ((0, 0), (0, Hp - H))).reshape(1, 4 * Hp)

        w_blocks.append(w_comb.astype(weight_dtype))
        b_blocks.append(b)

    return jnp.stack(w_blocks), jnp.stack(b_blocks)


# --------------------------------------------------------------------------
# Padded-layout forward (use this per timestep to avoid pad/un-pad traffic).
# --------------------------------------------------------------------------
@jax.jit
def multilayer_lstm_cell_forward_padded(x_pad, h_pad, c_pad, w_stack, b_stack):
    """x_pad: (Bp, Dp) in w_stack.dtype; h_pad: (L, Bp, Hp) in w_stack.dtype;
    c_pad: (L, Bp, Hp) float32.  Returns padded (h_out, c_out), both float32."""
    L, Bp, Hp = h_pad.shape
    Dp = x_pad.shape[1]
    K = Dp + Hp
    assert w_stack.shape == (L, K, 4 * Hp)
    w_item = jnp.dtype(w_stack.dtype).itemsize

    n_k, tk = _choose_k_tiles(K, 4 * Hp, w_item, _WEIGHT_VMEM_BUDGET)

    kernel = functools.partial(_fused_lstm_kernel,
                               hidden_pad=Hp, d_pad=Dp, tile_k=tk)

    # Explicit VMEM budget (double-buffered blocks + scratch), with headroom.
    vmem_bytes = (
        2 * tk * 4 * Hp * w_item          # weight block (double-buffered)
        + 2 * Bp * Dp * w_item            # x block
        + 2 * Bp * Hp * w_item            # h block
        + 2 * Bp * Hp * 4                 # c block
        + 2 * 4 * Hp * 4                  # bias block
        + 2 * 2 * Bp * Hp * 4             # h_out + c_out blocks
        + Bp * K * w_item                 # [x|h] carry scratch
        + Bp * 4 * Hp * 4                 # gates accumulator scratch
    )
    try:
        vmem_cap = pltpu.get_tpu_info().vmem_capacity_bytes
    except Exception:
        vmem_cap = 64 << 20
    vmem_limit = int(vmem_bytes * 1.5) + (2 << 20)
    vmem_limit = min(max(vmem_limit, 16 << 20), int(vmem_cap * 3 // 4))

    cost = pl.CostEstimate(
        flops=2 * Bp * K * 4 * Hp * L,
        transcendentals=5 * Bp * Hp * L,
        bytes_accessed=int(w_stack.size * w_item + x_pad.size * w_item
                           + h_pad.size * w_item + c_pad.size * 4
                           + b_stack.size * 4 + 2 * L * Bp * Hp * 4),
    )

    grid_spec = pltpu.PrefetchScalarGridSpec(
        num_scalar_prefetch=0,
        grid=(L, n_k),
        in_specs=[
            pl.BlockSpec((Bp, Dp), lambda l, k: (0, 0)),                  # x (layer 0)
            pl.BlockSpec((None, Bp, Hp), lambda l, k: (l, 0, 0)),         # hiddens[l]
            pl.BlockSpec((None, Bp, Hp), lambda l, k: (l, 0, 0)),         # cells[l]
            pl.BlockSpec((None, tk, 4 * Hp), lambda l, k: (l, k, 0)),     # W chunk
            pl.BlockSpec((None, 1, 4 * Hp), lambda l, k: (l, 0, 0)),      # merged bias
        ],
        out_specs=[
            pl.BlockSpec((None, Bp, Hp), lambda l, k: (l, 0, 0)),         # h_out[l]
            pl.BlockSpec((None, Bp, Hp), lambda l, k: (l, 0, 0)),         # c_out[l]
        ],
        scratch_shapes=[
            pltpu.VMEM((Bp, K), w_stack.dtype),       # [x|h] carry (compute dtype)
            pltpu.VMEM((Bp, 4 * Hp), jnp.float32),    # gates accumulator
        ],
    )

    return pl.pallas_call(
        kernel,
        out_shape=(
            jax.ShapeDtypeStruct((L, Bp, Hp), jnp.float32),
            jax.ShapeDtypeStruct((L, Bp, Hp), jnp.float32),
        ),
        grid_spec=grid_spec,
        compiler_params=pltpu.CompilerParams(
            dimension_semantics=("arbitrary", "arbitrary"),
            vmem_limit_bytes=vmem_limit),
        cost_estimate=cost,
    )(x_pad, h_pad, c_pad, w_stack, b_stack)


# --------------------------------------------------------------------------
# Convenience forward: pads, runs the fused kernel, un-pads.
# --------------------------------------------------------------------------
@jax.jit
def multilayer_lstm_cell_forward(x, hiddens, cell_states, w_stack, b_stack):
    """x: (B, input_size); hiddens/cell_states: (L, B, H).
    Returns (stacked_hiddens, stacked_cell_states), each (L, B, H)."""
    L, B, H = hiddens.shape
    Hp = w_stack.shape[2] // 4
    Dp = w_stack.shape[1] - Hp
    cdt = w_stack.dtype                       # compute (matmul-operand) dtype
    Bp = _batch_pad(B, cdt)

    x_pad = jnp.zeros((Bp, Dp), cdt).at[:B, :x.shape[1]].set(x.astype(cdt))
    h_pad = jnp.zeros((L, Bp, Hp), cdt).at[:, :B, :H].set(hiddens.astype(cdt))
    c_pad = jnp.zeros((L, Bp, Hp), jnp.float32).at[:, :B, :H].set(
        cell_states.astype(jnp.float32))

    h_out, c_out = multilayer_lstm_cell_forward_padded(
        x_pad, h_pad, c_pad, w_stack, b_stack)

    # Un-pad; hidden keeps the recurrent-state dtype (not x's dtype).
    h_out = h_out[:, :B, :H].astype(hiddens.dtype)
    c_out = c_out[:, :B, :H].astype(cell_states.dtype)
    return h_out, c_out


# --------------------------------------------------------------------------
# Parameter init + pure-JAX reference (PyTorch nn.LSTMCell semantics).
# --------------------------------------------------------------------------
def _init_params(key, input_size, hidden_size, num_layers, dtype=jnp.float32):
    params = []
    sizes = [input_size] + [hidden_size] * num_layers
    bound = 1.0 / jnp.sqrt(jnp.asarray(hidden_size, dtype))
    for i in range(num_layers):
        key, k1, k2, k3, k4 = jax.random.split(key, 5)
        in_dim, out_dim = sizes[i], sizes[i + 1]
        w_ih = jax.random.uniform(k1, (4 * out_dim, in_dim), dtype, -bound, bound)
        w_hh = jax.random.uniform(k2, (4 * out_dim, out_dim), dtype, -bound, bound)
        b_ih = jax.random.uniform(k3, (4 * out_dim,), dtype, -bound, bound)
        b_hh = jax.random.uniform(k4, (4 * out_dim,), dtype, -bound, bound)
        params.append((w_ih, w_hh, b_ih, b_hh))
    return params


def _reference_forward(x, hiddens, cell_states, params):
    curr_input = x
    out_h, out_c = [], []
    for layer_idx, (w_ih, w_hh, b_ih, b_hh) in enumerate(params):
        h = hiddens[layer_idx]
        c = cell_states[layer_idx]
        gates = curr_input @ w_ih.T + b_ih + h @ w_hh.T + b_hh
        H = h.shape[1]
        i_g = jax.nn.sigmoid(gates[:, 0 * H:1 * H])
        f_g = jax.nn.sigmoid(gates[:, 1 * H:2 * H])
        g_g = jnp.tanh(gates[:, 2 * H:3 * H])
        o_g = jax.nn.sigmoid(gates[:, 3 * H:4 * H])
        c_new = f_g * c + i_g * g_g
        h_new = o_g * jnp.tanh(c_new)
        out_h.append(h_new)
        out_c.append(c_new)
        curr_input = h_new
    return jnp.stack(out_h), jnp.stack(out_c)


if __name__ == "__main__":
    B = 8
    INPUT_SIZE = 16
    HIDDEN = 32
    NUM_LAYERS = 3

    key = jax.random.PRNGKey(0)
    k_params, k_x, k_h, k_c = jax.random.split(key, 4)

    params = _init_params(k_params, INPUT_SIZE, HIDDEN, NUM_LAYERS)
    x = jax.random.normal(k_x, (B, INPUT_SIZE), jnp.float32)
    hiddens = jax.random.normal(k_h, (NUM_LAYERS, B, HIDDEN), jnp.float32)
    cells = jax.random.normal(k_c, (NUM_LAYERS, B, HIDDEN), jnp.float32)

    h_ref, c_ref = _reference_forward(x, hiddens, cells, params)

    # --- f32 weight path: exact-semantics check against the reference. -----
    w32, b32 = prepare_params(params, INPUT_SIZE, HIDDEN,
                              weight_dtype=jnp.float32)
    h32, c32 = multilayer_lstm_cell_forward(x, hiddens, cells, w32, b32)
    h32 = jax.block_until_ready(h32)
    c32 = jax.block_until_ready(c32)
    assert h32.shape == (NUM_LAYERS, B, HIDDEN)
    assert c32.shape == (NUM_LAYERS, B, HIDDEN)
    assert jnp.allclose(h32, h_ref, atol=1e-5, rtol=1e-5)
    assert jnp.allclose(c32, c_ref, atol=1e-5, rtol=1e-5)

    # --- default bf16 weight path (halves weight HBM traffic, MXU-native). --
    # Looser tolerance is the expected bf16-operand precision change.
    wbf, bbf = prepare_params(params, INPUT_SIZE, HIDDEN)   # bf16 by default
    hbf, cbf = multilayer_lstm_cell_forward(x, hiddens, cells, wbf, bbf)
    hbf = jax.block_until_ready(hbf)
    cbf = jax.block_until_ready(cbf)
    assert hbf.shape == (NUM_LAYERS, B, HIDDEN)
    assert cbf.shape == (NUM_LAYERS, B, HIDDEN)
    assert jnp.allclose(hbf, h_ref, atol=3e-2, rtol=3e-2)
    assert jnp.allclose(cbf, c_ref, atol=3e-2, rtol=3e-2)

    print("KERNEL_OK")
</pallas_src>

<mosaic_0001>
module attributes {stable_mosaic.version = 11 : i64} {
  func.func @_fused_lstm_kernel(%arg0: i32, %arg1: i32, %arg2: memref<8x128xf32, #tpu.memory_space<vmem>>, %arg3: memref<1x8x128xf32, #tpu.memory_space<vmem>>, %arg4: memref<1x8x128xf32, #tpu.memory_space<vmem>>, %arg5: memref<1x256x512xf32, #tpu.memory_space<vmem>>, %arg6: memref<1x1x512xf32, #tpu.memory_space<vmem>>, %arg7: memref<1x8x128xf32, #tpu.memory_space<vmem>>, %arg8: memref<1x8x128xf32, #tpu.memory_space<vmem>>, %arg9: memref<8x256xf32, #tpu.memory_space<vmem>>, %arg10: memref<8x512xf32, #tpu.memory_space<vmem>>) attributes {dimension_semantics = [#tpu.dimension_semantics<arbitrary>, #tpu.dimension_semantics<arbitrary>], iteration_bounds = array<i64: 3, 1>, scalar_prefetch = 0 : i64, scratch_operands = 2 : i64, tpu.core_type = #tpu.core_type<tc>, window_params = [{pipeline_mode = #tpu.pipeline_mode<synchronous>, transform_indices = @transform_0, window_bounds = array<i64: 8, 128>}, {transform_indices = @transform_1, window_bounds = array<i64: 1, 8, 128>}, {transform_indices = @transform_2, window_bounds = array<i64: 1, 8, 128>}, {transform_indices = @transform_3, window_bounds = array<i64: 1, 256, 512>}, {transform_indices = @transform_4, window_bounds = array<i64: 1, 1, 512>}, {transform_indices = @transform_5, window_bounds = array<i64: 1, 8, 128>}, {transform_indices = @transform_6, window_bounds = array<i64: 1, 8, 128>}]} {
    %c0_i32 = arith.constant 0 : i32
    %0 = arith.cmpi eq, %arg0, %c0_i32 : i32
    %c0_i32_0 = arith.constant 0 : i32
    %1 = arith.cmpi eq, %arg1, %c0_i32_0 : i32
    %2 = arith.andi %0, %1 : i1
    %3 = arith.extui %2 : i1 to i32
    %c0_i32_1 = arith.constant 0 : i32
    %4 = arith.cmpi ne, %3, %c0_i32_1 : i32
    scf.if %4 {
      %c0_13 = arith.constant 0 : index
      %c0_14 = arith.constant 0 : index
      %24 = vector.load %arg2[%c0_13, %c0_14] : memref<8x128xf32, #tpu.memory_space<vmem>>, vector<8x128xf32>
      %c0_15 = arith.constant 0 : index
      %c0_16 = arith.constant 0 : index
      %25 = vector.load %arg9[%c0_15, %c0_16] : memref<8x256xf32, #tpu.memory_space<vmem>>, vector<8x128xf32>
      tpu.vector_store %arg9[%c0_15, %c0_16], %24 {strides = array<i32>} : memref<8x256xf32, #tpu.memory_space<vmem>>, vector<8x128xf32>,
    } else {
    }
    %c0_i32_2 = arith.constant 0 : i32
    %5 = arith.cmpi eq, %arg1, %c0_i32_2 : i32
    %6 = arith.extui %5 : i1 to i32
    %c0_i32_3 = arith.constant 0 : i32
    %7 = arith.cmpi ne, %6, %c0_i32_3 : i32
    scf.if %7 {
      %c0_13 = arith.constant 0 : index
      %c0_14 = arith.constant 0 : index
      %c0_15 = arith.constant 0 : index
      %24 = vector.load %arg3[%c0_13, %c0_14, %c0_15] : memref<1x8x128xf32, #tpu.memory_space<vmem>>, vector<1x8x128xf32>
      %25 = vector.shape_cast %24 : vector<1x8x128xf32> to vector<8x128xf32>
      %c0_16 = arith.constant 0 : index
      %c128 = arith.constant 128 : index
      %26 = vector.load %arg9[%c0_16, %c128] : memref<8x256xf32, #tpu.memory_space<vmem>>, vector<8x128xf32>
      tpu.vector_store %arg9[%c0_16, %c128], %25 {strides = array<i32>} : memref<8x256xf32, #tpu.memory_space<vmem>>, vector<8x128xf32>,
    } else {
    }
    %c256_i32 = arith.constant 256 : i32
    %8 = arith.muli %arg1, %c256_i32 : i32
    %9 = tpu.assume_multiple %8, 128 : i32
    %c0 = arith.constant 0 : index
    %10 = arith.index_cast %9 : i32 to index
    %11 = vector.load %arg9[%c0, %10] : memref<8x256xf32, #tpu.memory_space<vmem>>, vector<8x256xf32>
    %c0_4 = arith.constant 0 : index
    %c0_5 = arith.constant 0 : index
    %c0_6 = arith.constant 0 : index
    %12 = vector.load %arg5[%c0_4, %c0_5, %c0_6] : memref<1x256x512xf32, #tpu.memory_space<vmem>>, vector<1x256x512xf32>
    %13 = vector.shape_cast %12 : vector<1x256x512xf32> to vector<256x512xf32>
    %cst = arith.constant dense<0.000000e+00> : vector<8x512xf32>
    %14 = tpu.matmul %11, %13, %cst {dimension_numbers = #tpu.dot_dimension_numbers<[1], [0], [0], [1], [0, 0, 1, 1], [], []>} : vector<8x256xf32>, vector<256x512xf32>, vector<8x512xf32> -> vector<8x512xf32>
    %c0_i32_7 = arith.constant 0 : i32
    %15 = arith.cmpi eq, %arg1, %c0_i32_7 : i32
    %16 = arith.extui %15 : i1 to i32
    %c0_i32_8 = arith.constant 0 : i32
    %17 = arith.cmpi ne, %16, %c0_i32_8 : i32
    scf.if %17 {
      %c0_13 = arith.constant 0 : index
      %c0_14 = arith.constant 0 : index
      %24 = vector.load %arg10[%c0_13, %c0_14] : memref<8x512xf32, #tpu.memory_space<vmem>>, vector<8x512xf32>
      tpu.vector_store %arg10[%c0_13, %c0_14], %14 {strides = array<i32>} : memref<8x512xf32, #tpu.memory_space<vmem>>, vector<8x512xf32>,
    } else {
    }
    %c0_i32_9 = arith.constant 0 : i32
    %18 = arith.cmpi sgt, %arg1, %c0_i32_9 : i32
    %19 = arith.extui %18 : i1 to i32
    %c0_i32_10 = arith.constant 0 : i32
    %20 = arith.cmpi ne, %19, %c0_i32_10 : i32
    scf.if %20 {
      %c0_13 = arith.constant 0 : index
      %c0_14 = arith.constant 0 : index
      %24 = vector.load %arg10[%c0_13, %c0_14] : memref<8x512xf32, #tpu.memory_space<vmem>>, vector<8x512xf32>
      %25 = arith.addf %24, %14 : vector<8x512xf32>
      %c0_15 = arith.constant 0 : index
      %c0_16 = arith.constant 0 : index
      %26 = vector.load %arg10[%c0_15, %c0_16] : memref<8x512xf32, #tpu.memory_space<vmem>>, vector<8x512xf32>
      tpu.vector_store %arg10[%c0_15, %c0_16], %25 {strides = array<i32>} : memref<8x512xf32, #tpu.memory_space<vmem>>, vector<8x512xf32>,
    } else {
    }
    %c0_i32_11 = arith.constant 0 : i32
    %21 = arith.cmpi eq, %arg1, %c0_i32_11 : i32
    %22 = arith.extui %21 : i1 to i32
    %c0_i32_12 = arith.constant 0 : i32
    %23 = arith.cmpi ne, %22, %c0_i32_12 : i32
    scf.if %23 {
      %c0_13 = arith.constant 0 : index
      %c0_14 = arith.constant 0 : index
      %24 = vector.load %arg10[%c0_13, %c0_14] : memref<8x512xf32, #tpu.memory_space<vmem>>, vector<8x512xf32>
      %c0_15 = arith.constant 0 : index
      %c0_16 = arith.constant 0 : index
      %c0_17 = arith.constant 0 : index
      %25 = vector.load %arg6[%c0_15, %c0_16, %c0_17] : memref<1x1x512xf32, #tpu.memory_space<vmem>>, vector<1x1x512xf32>
      %26 = vector.shape_cast %25 : vector<1x1x512xf32> to vector<1x512xf32>
      %27 = vector.broadcast %26 : vector<1x512xf32> to vector<8x512xf32>
      %28 = arith.addf %24, %27 : vector<8x512xf32>
      %29 = vector.extract_strided_slice %28 {offsets = [0, 0], sizes = [8, 128], strides = [1, 1]} : vector<8x512xf32> to vector<8x128xf32>
      %30 = arith.negf %29 : vector<8x128xf32>
      %31 = math.exp %30 : vector<8x128xf32>
      %cst_18 = arith.constant 1.000000e+00 : f32
      %32 = vector.broadcast %cst_18 : f32 to vector<8x128xf32>
      %33 = arith.addf %32, %31 : vector<8x128xf32>
      %34 = arith.divf %32, %33 : vector<8x128xf32>
      %35 = vector.extract_strided_slice %28 {offsets = [0, 128], sizes = [8, 128], strides = [1, 1]} : vector<8x512xf32> to vector<8x128xf32>
      %36 = arith.negf %35 : vector<8x128xf32>
      %37 = math.exp %36 : vector<8x128xf32>
      %cst_19 = arith.constant 1.000000e+00 : f32
      %38 = vector.broadcast %cst_19 : f32 to vector<8x128xf32>
      %39 = arith.addf %38, %37 : vector<8x128xf32>
      %40 = arith.divf %38, %39 : vector<8x128xf32>
      %41 = vector.extract_strided_slice %28 {offsets = [0, 256], sizes = [8, 128], strides = [1, 1]} : vector<8x512xf32> to vector<8x128xf32>
      %42 = math.tanh %41 : vector<8x128xf32>
      %43 = vector.extract_strided_slice %28 {offsets = [0, 384], sizes = [8, 128], strides = [1, 1]} : vector<8x512xf32> to vector<8x128xf32>
      %44 = arith.negf %43 : vector<8x128xf32>
      %45 = math.exp %44 : vector<8x128xf32>
      %cst_20 = arith.constant 1.000000e+00 : f32
      %46 = vector.broadcast %cst_20 : f32 to vector<8x128xf32>
      %47 = arith.addf %46, %45 : vector<8x128xf32>
      %48 = arith.divf %46, %47 : vector<8x128xf32>
      %c0_21 = arith.constant 0 : index
      %c0_22 = arith.constant 0 : index
      %c0_23 = arith.constant 0 : index
      %49 = vector.load %arg4[%c0_21, %c0_22, %c0_23] : memref<1x8x128xf32, #tpu.memory_space<vmem>>, vector<1x8x128xf32>
      %50 = vector.shape_cast %49 : vector<1x8x128xf32> to vector<8x128xf32>
      %51 = arith.mulf %40, %50 : vector<8x128xf32>
      %52 = arith.mulf %34, %42 : vector<8x128xf32>
      %53 = arith.addf %51, %52 : vector<8x128xf32>
      %54 = math.tanh %53 : vector<8x128xf32>
      %55 = arith.mulf %48, %54 : vector<8x128xf32>
      %c0_24 = arith.constant 0 : index
      %c0_25 = arith.constant 0 : index
      %c0_26 = arith.constant 0 : index
      %56 = vector.load %arg7[%c0_24, %c0_25, %c0_26] : memref<1x8x128xf32, #tpu.memory_space<vmem>>, vector<1x8x128xf32>
      %57 = vector.shape_cast %56 : vector<1x8x128xf32> to vector<8x128xf32>
      %58 = vector.shape_cast %55 : vector<8x128xf32> to vector<1x8x128xf32>
      tpu.vector_store %arg7[%c0_24, %c0_25, %c0_26], %58 {strides = array<i32>} : memref<1x8x128xf32, #tpu.memory_space<vmem>>, vector<1x8x128xf32>,
      %c0_27 = arith.constant 0 : index
      %c0_28 = arith.constant 0 : index
      %c0_29 = arith.constant 0 : index
      %59 = vector.load %arg8[%c0_27, %c0_28, %c0_29] : memref<1x8x128xf32, #tpu.memory_space<vmem>>, vector<1x8x128xf32>
      %60 = vector.shape_cast %59 : vector<1x8x128xf32> to vector<8x128xf32>
      %61 = vector.shape_cast %53 : vector<8x128xf32> to vector<1x8x128xf32>
      tpu.vector_store %arg8[%c0_27, %c0_28, %c0_29], %61 {strides = array<i32>} : memref<1x8x128xf32, #tpu.memory_space<vmem>>, vector<1x8x128xf32>,
      %c0_30 = arith.constant 0 : index
      %c0_31 = arith.constant 0 : index
      %62 = vector.load %arg9[%c0_30, %c0_31] : memref<8x256xf32, #tpu.memory_space<vmem>>, vector<8x128xf32>
      tpu.vector_store %arg9[%c0_30, %c0_31], %55 {strides = array<i32>} : memref<8x256xf32, #tpu.memory_space<vmem>>, vector<8x128xf32>,
    } else {
    }
    return
  }
  func.func @transform_0(%arg0: i32, %arg1: i32) -> (i32, i32) {
    %c0_i32 = arith.constant 0 : i32
    %c0_i32_0 = arith.constant 0 : i32
    %c0_i32_1 = arith.constant 0 : i32
    return %c0_i32, %c0_i32_0 : i32, i32
  }
  func.func @transform_1(%arg0: i32, %arg1: i32) -> (i32, i32, i32) {
    %c0_i32 = arith.constant 0 : i32
    %c0_i32_0 = arith.constant 0 : i32
    %c0_i32_1 = arith.constant 0 : i32
    return %arg0, %c0_i32, %c0_i32_0 : i32, i32, i32
  }
  func.func @transform_2(%arg0: i32, %arg1: i32) -> (i32, i32, i32) {
    %c0_i32 = arith.constant 0 : i32
    %c0_i32_0 = arith.constant 0 : i32
    %c0_i32_1 = arith.constant 0 : i32
    return %arg0, %c0_i32, %c0_i32_0 : i32, i32, i32
  }
  func.func @transform_3(%arg0: i32, %arg1: i32) -> (i32, i32, i32) {
    %c0_i32 = arith.constant 0 : i32
    %c0_i32_0 = arith.constant 0 : i32
    return %arg0, %arg1, %c0_i32 : i32, i32, i32
  }
  func.func @transform_4(%arg0: i32, %arg1: i32) -> (i32, i32, i32) {
    %c0_i32 = arith.constant 0 : i32
    %c0_i32_0 = arith.constant 0 : i32
    %c0_i32_1 = arith.constant 0 : i32
    return %arg0, %c0_i32, %c0_i32_0 : i32, i32, i32
  }
  func.func @transform_5(%arg0: i32, %arg1: i32) -> (i32, i32, i32) {
    %c0_i32 = arith.constant 0 : i32
    %c0_i32_0 = arith.constant 0 : i32
    %c0_i32_1 = arith.constant 0 : i32
    return %arg0, %c0_i32, %c0_i32_0 : i32, i32, i32
  }
  func.func @transform_6(%arg0: i32, %arg1: i32) -> (i32, i32, i32) {
    %c0_i32 = arith.constant 0 : i32
    %c0_i32_0 = arith.constant 0 : i32
    %c0_i32_1 = arith.constant 0 : i32
    return %arg0, %c0_i32, %c0_i32_0 : i32, i32, i32
  }
}

</mosaic_0001>

<llo_original>
// kernel: multilayer_lstm_cell_forward_padded.1
$region0: #{multilayer_lstm_cell_forward_padded.1}
  #allocation0 [shape = 'u32[]', space=smem, size = 0x4, offset = 0x4, fixed_abs, tag = 'smem constant byte address 0x4 - core index']
  #allocation1 [shape = 'u32[144,128]{1,0:T(1,128)}', space=vmem, size = 0x12000, scoped, tag = 'internal scratch']
  #allocation2 [shape = 'f32[8,256]{1,0:T(8,128)}', space=vmem, size = 0x2000, scoped, tag = 'scratch operand']
  #allocation3 [shape = 'f32[8,512]{1,0:T(8,128)}', space=vmem, size = 0x4000, scoped, tag = 'scratch operand']
  %s0 = inlined_call_operand.hbm [shape: f32[8,128], index: 0, kind: input, shape index: {}]
  %s1 = inlined_call_operand.hbm [shape: f32[3,8,128], index: 1, kind: input, shape index: {}]
  %s2 = inlined_call_operand.hbm [shape: f32[3,8,128], index: 2, kind: input, shape index: {}]
  %s3 = inlined_call_operand.hbm [shape: f32[3,256,512], index: 3, kind: input, shape index: {}]
  %s4 = inlined_call_operand.hbm [shape: f32[3,1,512], index: 4, kind: input, shape index: {}]
  %s5 = inlined_call_operand.hbm [shape: f32[3,8,128], index: 5, kind: output, shape index: {0}]
  %s6 = inlined_call_operand.hbm [shape: f32[3,8,128], index: 6, kind: output, shape index: {1}]
  %7 = xla_tuple %s5, %s6
  %s8 = sld [smem:[#allocation0]]
  $region101: #{multilayer_lstm_cell_forward_padded.1} parent=0
    _
  %s10 = ssub.s32 1, %s8
  %s11 = scalar_select 0, %s10, %s8
  $region1: #{multilayer_lstm_cell_forward_padded.1} parent=0
    #allocation4 [shape = 'u8[4096]{0}', space=vmem, size = 0x1000, scoped, tag = 'input window, operand 0, single buffered']
    #allocation5 [shape = 's32[2]{0}', space=sflag, size = 0x8, scoped, tag = 'scoped memory for multilayer_lstm_cell_forward_padded.1']
    #allocation6 [shape = 's32[2]{0}', space=sflag, size = 0x8, scoped, tag = 'scoped memory for multilayer_lstm_cell_forward_padded.1']
    #allocation7 [shape = 'u8[8192]{0}', space=vmem, size = 0x2000, scoped, tag = 'input window, operand 1']
    #allocation8 [shape = 's32[2]{0}', space=sflag, size = 0x8, scoped, tag = 'scoped memory for multilayer_lstm_cell_forward_padded.1']
    #allocation9 [shape = 'u8[8192]{0}', space=vmem, size = 0x2000, scoped, tag = 'input window, operand 2']
    #allocation10 [shape = 'u8[1048576]{0}', space=vmem, size = 0x100000, scoped, tag = 'input window, operand 3']
    #allocation11 [shape = 's32[2]{0}', space=sflag, size = 0x8, scoped, tag = 'scoped memory for multilayer_lstm_cell_forward_padded.1']
    #allocation12 [shape = 'u8[4096]{0}', space=vmem, size = 0x1000, scoped, tag = 'input window, operand 4']
    #allocation13 [shape = 'u8[8192]{0}', space=vmem, size = 0x2000, scoped, tag = 'output window, operand 0']
    #allocation14 [shape = 'u8[8192]{0}', space=vmem, size = 0x2000, scoped, tag = 'output window, operand 1']
    #allocation15 [shape = 's32[2]{0}', space=sflag, size = 0x8, scoped, tag = 'scoped memory for multilayer_lstm_cell_forward_padded.1']
    %12 = vsyncpa [#allocation5], 0
    %13 = vsyncpa [#allocation8], 0
    %s14 = scalar_lea.sflag [#allocation8], 1
    %15 = vsyncpa %s14, 0
    %16 = vsyncpa [#allocation11], 0
    %s17 = scalar_lea.sflag [#allocation11], 1
    %18 = vsyncpa %s17, 0
    %19 = vsyncpa [#allocation6], 0
    %s20 = scalar_lea.sflag [#allocation6], 1
    %21 = vsyncpa %s20, 0
    %22 = vsyncpa [#allocation15], 0
    %s23 = scalar_lea.sflag [#allocation15], 1
    %24 = vsyncpa %s23, 0
    loop: start=0, step=1, limit=5
    $region2: #{multilayer_lstm_cell_forward_padded.1} parent=1 // loop_pre_header
      _
    $region3: #{multilayer_lstm_cell_forward_padded.1} parent=1 // loop_header
      %s26 = sphi 0, %s30
      %p27 = scmp.ge.s32.totalorder %s26, 5
      %s33 = sphi 0, %s45
      %s34 = sphi 0, %s41
      %s35 = sphi 0, %s33
      %s36 = sphi 0, %s34
      %s37 = sphi 0, %s35
      %s38 = sphi 0, %s36
      %s46 = sphi 0, %s46
      %s48 = sphi 0, %s46
      %s49 = sphi 0, %s48
      %s63 = sphi 0, %s49
      %s69 = sphi 0, %s71
      %s72 = sphi 0, %s69
      %s73 = sphi 0, %s72
      %s89 = sphi 0, %s73
      %s95 = sphi 0, %s97
      %s98 = sphi 0, %s95
      %s99 = sphi 0, %s98
      %s115 = sphi 0, %s99
      %s123 = sphi 0, %s125
      %s126 = sphi 0, %s123
      %s127 = sphi 0, %s126
      %s143 = sphi 0, %s127
      %s149 = sphi 0, %s151
      %s152 = sphi 0, %s149
      %s153 = sphi 0, %s152
      %s169 = sphi 0, %s153
      %s175 = sphi 0, %s177
      %s178 = sphi 0, %s175
      %s179 = sphi 0, %s178
      %s195 = sphi 0, %s179
      %s201 = sphi 0, %s203
      %s204 = sphi 0, %s201
      %s205 = sphi 0, %s204
      %s221 = sphi 0, %s205
    $region4: #{multilayer_lstm_cell_forward_padded.1} parent=1 // loop_header_branch
      %29 = sbr.rel (%p27) target = $region8
    $region5: #{multilayer_lstm_cell_forward_padded.1} parent=1 // loop_body
      %s31 = ssub.s32 %s26, 1
      %s32 = ssub.s32 %s26, 2
      %s39 = sadd.s32 1, %s34
      %p40 = scmp.ge.s32.totalorder %s39, 1
      %s41 = scalar_select %p40, 0, %s39
      %s42 = sadd.s32 1, %s33
      %s43 = scalar_select %p40, %s42, %s33
      %p44 = scmp.ge.s32.totalorder %s43, 3
      %s45 = scalar_select %p44, 0, %s43
      %s47 = sadd.s32 %s46, 1
      %p50 = scmp.eq.s32.totalorder %s26, 2
      %p51 = scmp.ne.s32.totalorder %s46, %s48
      %p52 = scmp.eq.s32.totalorder %s26, 0
      %p53 = por %p51, %p52
      %p54 = scmp.ne.s32.totalorder %s46, %s48
      %p55 = scmp.eq.s32.totalorder %s31, 2
      %p56 = por %p54, %p55
      %p57 = scmp.ne.s32.totalorder %s48, %s49
      %p58 = scmp.eq.s32.totalorder %s31, 0
      %p59 = por %p57, %p58
      %p60 = scmp.ne.s32.totalorder %s48, %s49
      %p61 = scmp.eq.s32.totalorder %s32, 2
      %p62 = por %p60, %p61
      %p64 = scmp.ne.s32.totalorder %s49, %s63
      %p65 = scmp.eq.s32.totalorder %s32, 0
      %p66 = por %p64, %p65
      %s67 = ssub.s32 %s33, %s45
      %p68 = scmp.eq.s32.totalorder %s67, 0
      %s70 = sadd.s32 %s69, 1
      %s71 = scalar_select %p68, %s69, %s70
      %p74 = pneg %p68
      %p75 = scmp.eq.s32.totalorder %s26, 2
      %p76 = por %p74, %p75
      %p77 = scmp.ne.s32.totalorder %s69, %s72
      %p78 = scmp.eq.s32.totalorder %s26, 0
      %p79 = por %p77, %p78
      %p80 = scmp.ne.s32.totalorder %s69, %s72
      %p81 = scmp.eq.s32.totalorder %s31, 2
      %p82 = por %p80, %p81
      %p83 = scmp.ne.s32.totalorder %s72, %s73
      %p84 = scmp.eq.s32.totalorder %s31, 0
      %p85 = por %p83, %p84
      %p86 = scmp.ne.s32.totalorder %s72, %s73
      %p87 = scmp.eq.s32.totalorder %s32, 2
      %p88 = por %p86, %p87
      %p90 = scmp.ne.s32.totalorder %s73, %s89
      %p91 = scmp.eq.s32.totalorder %s32, 0
      %p92 = por %p90, %p91
      %s93 = ssub.s32 %s33, %s45
      %p94 = scmp.eq.s32.totalorder %s93, 0
      %s96 = sadd.s32 %s95, 1
      %s97 = scalar_select %p94, %s95, %s96
      %p100 = pneg %p94
      %p101 = scmp.eq.s32.totalorder %s26, 2
      %p102 = por %p100, %p101
      %p103 = scmp.ne.s32.totalorder %s95, %s98
      %p104 = scmp.eq.s32.totalorder %s26, 0
      %p105 = por %p103, %p104
      %p106 = scmp.ne.s32.totalorder %s95, %s98
      %p107 = scmp.eq.s32.totalorder %s31, 2
      %p108 = por %p106, %p107
      %p109 = scmp.ne.s32.totalorder %s98, %s99
      %p110 = scmp.eq.s32.totalorder %s31, 0
      %p111 = por %p109, %p110
      %p112 = scmp.ne.s32.totalorder %s98, %s99
      %p113 = scmp.eq.s32.totalorder %s32, 2
      %p114 = por %p112, %p113
      %p116 = scmp.ne.s32.totalorder %s99, %s115
      %p117 = scmp.eq.s32.totalorder %s32, 0
      %p118 = por %p116, %p117
      %s119 = ssub.s32 %s33, %s45
      %s120 = ssub.s32 %s34, %s41
      %s121 = sor.u32 %s119, %s120
      %p122 = scmp.eq.s32.totalorder %s121, 0
      %s124 = sadd.s32 %s123, 1
      %s125 = scalar_select %p122, %s123, %s124
      %p128 = pneg %p122
      %p129 = scmp.eq.s32.totalorder %s26, 2
      %p130 = por %p128, %p129
      %p131 = scmp.ne.s32.totalorder %s123, %s126
      %p132 = scmp.eq.s32.totalorder %s26, 0
      %p133 = por %p131, %p132
      %p134 = scmp.ne.s32.totalorder %s123, %s126
      %p135 = scmp.eq.s32.totalorder %s31, 2
      %p136 = por %p134, %p135
      %p137 = scmp.ne.s32.totalorder %s126, %s127
      %p138 = scmp.eq.s32.totalorder %s31, 0
      %p139 = por %p137, %p138
      %p140 = scmp.ne.s32.totalorder %s126, %s127
      %p141 = scmp.eq.s32.totalorder %s32, 2
      %p142 = por %p140, %p141
      %p144 = scmp.ne.s32.totalorder %s127, %s143
      %p145 = scmp.eq.s32.totalorder %s32, 0
      %p146 = por %p144, %p145
      %s147 = ssub.s32 %s33, %s45
      %p148 = scmp.eq.s32.totalorder %s147, 0
      %s150 = sadd.s32 %s149, 1
      %s151 = scalar_select %p148, %s149, %s150
      %p154 = pneg %p148
      %p155 = scmp.eq.s32.totalorder %s26, 2
      %p156 = por %p154, %p155
      %p157 = scmp.ne.s32.totalorder %s149, %s152
      %p158 = scmp.eq.s32.totalorder %s26, 0
      %p159 = por %p157, %p158
      %p160 = scmp.ne.s32.totalorder %s149, %s152
      %p161 = scmp.eq.s32.totalorder %s31, 2
      %p162 = por %p160, %p161
      %p163 = scmp.ne.s32.totalorder %s152, %s153
      %p164 = scmp.eq.s32.totalorder %s31, 0
      %p165 = por %p163, %p164
      %p166 = scmp.ne.s32.totalorder %s152, %s153
      %p167 = scmp.eq.s32.totalorder %s32, 2
      %p168 = por %p166, %p167
      %p170 = scmp.ne.s32.totalorder %s153, %s169
      %p171 = scmp.eq.s32.totalorder %s32, 0
      %p172 = por %p170, %p171
      %s173 = ssub.s32 %s33, %s45
      %p174 = scmp.eq.s32.totalorder %s173, 0
      %s176 = sadd.s32 %s175, 1
      %s177 = scalar_select %p174, %s175, %s176
      %p180 = pneg %p174
      %p181 = scmp.eq.s32.totalorder %s26, 2
      %p182 = por %p180, %p181
      %p183 = scmp.ne.s32.totalorder %s175, %s178
      %p184 = scmp.eq.s32.totalorder %s26, 0
      %p185 = por %p183, %p184
      %p186 = scmp.ne.s32.totalorder %s175, %s178
      %p187 = scmp.eq.s32.totalorder %s31, 2
      %p188 = por %p186, %p187
      %p189 = scmp.ne.s32.totalorder %s178, %s179
      %p190 = scmp.eq.s32.totalorder %s31, 0
      %p191 = por %p189, %p190
      %p192 = scmp.ne.s32.totalorder %s178, %s179
      %p193 = scmp.eq.s32.totalorder %s32, 2
      %p194 = por %p192, %p193
      %p196 = scmp.ne.s32.totalorder %s179, %s195
      %p197 = scmp.eq.s32.totalorder %s32, 0
      %p198 = por %p196, %p197
      %s199 = ssub.s32 %s33, %s45
      %p200 = scmp.eq.s32.totalorder %s199, 0
      %s202 = sadd.s32 %s201, 1
      %s203 = scalar_select %p200, %s201, %s202
      %p206 = pneg %p200
      %p207 = scmp.eq.s32.totalorder %s26, 2
      %p208 = por %p206, %p207
      %p209 = scmp.ne.s32.totalorder %s201, %s204
      %p210 = scmp.eq.s32.totalorder %s26, 0
      %p211 = por %p209, %p210
      %p212 = scmp.ne.s32.totalorder %s201, %s204
      %p213 = scmp.eq.s32.totalorder %s31, 2
      %p214 = por %p212, %p213
      %p215 = scmp.ne.s32.totalorder %s204, %s205
      %p216 = scmp.eq.s32.totalorder %s31, 0
      %p217 = por %p215, %p216
      %p218 = scmp.ne.s32.totalorder %s204, %s205
      %p219 = scmp.eq.s32.totalorder %s32, 2
      %p220 = por %p218, %p219
      %p222 = scmp.ne.s32.totalorder %s205, %s221
      %p223 = scmp.eq.s32.totalorder %s32, 0
      %p224 = por %p222, %p223
      %p225 = scmp.le.s32.totalorder 1, %s26
      %p226 = scmp.lt.s32.totalorder %s26, 4
      %p227 = pnand %p225, %p226
      %p228 = pneg %p227
      // Predicated region
      $region9: #{multilayer_lstm_cell_forward_padded.1} parent=5 // pred_check
        _
      $region10: #{multilayer_lstm_cell_forward_padded.1} parent=5 // pred_check_branch
        %230 = sbr.rel (%p227) target = $region12
      $region11: #{multilayer_lstm_cell_forward_padded.1} parent=5 // pred_region
        %s231 = ssub.s32 %s26, 1
        // Predicated region
        $region13: #{multilayer_lstm_cell_forward_padded.1} parent=11 // pred_check
          %p232 = pneg %p59
        $region14: #{multilayer_lstm_cell_forward_padded.1} parent=11 // pred_check_branch
          %234 = sbr.rel (%p232) target = $region16
        $region15: #{multilayer_lstm_cell_forward_padded.1} parent=11 // pred_region
          %s236 = ssub.s32 128, 128
          %237 = vsyncadd [#allocation5], %s236
          %s239 = sshll.u32 [#allocation4], 4
          %s240 = int_to_ptr.vmem [resolvable:$true] %s239
          %242 = dma.hbm_to_vmem [thread:$0]  %s0, 128, %s240, [#allocation5]
        $region16: #{multilayer_lstm_cell_forward_padded.1} parent=11 // pred_fallthru
          _
      $region12: #{multilayer_lstm_cell_forward_padded.1} parent=5 // pred_fallthru
        _
      %p243 = scmp.lt.s32.totalorder %s26, 3
      // Predicated region
      $region17: #{multilayer_lstm_cell_forward_padded.1} parent=5 // pred_check
        %p244 = pneg %p243
      $region18: #{multilayer_lstm_cell_forward_padded.1} parent=5 // pred_check_branch
        %246 = sbr.rel (%p244) target = $region20
      $region19: #{multilayer_lstm_cell_forward_padded.1} parent=5 // pred_region
        // Predicated region
        $region21: #{multilayer_lstm_cell_forward_padded.1} parent=19 // pred_check
          %p247 = pneg %p79
        $region22: #{multilayer_lstm_cell_forward_padded.1} parent=19 // pred_check_branch
          %249 = sbr.rel (%p247) target = $region24
        $region23: #{multilayer_lstm_cell_forward_padded.1} parent=19 // pred_region
          %s250 = sand.u32 %s26, 1
          %s251 = scalar_lea.sflag [#allocation8], %s250
          %s252 = sand.u32 %s69, 1
          %s253 = smul.addr %s252, 8
          %s254 = scalar_lea.vmem [#allocation7], %s253
          %s256 = ssub.s32 128, 128
          %257 = vsyncadd %s251, %s256
          %s258 = smul.addr %s33, 128
          %s259 = scalar_lea.hbm %s1, %s258
          %s261 = sshll.u32 %s254, 4
          %s262 = int_to_ptr.vmem [resolvable:$true] %s261
          %264 = dma.hbm_to_vmem [thread:$0]  %s259, 128, %s262, %s251
        $region24: #{multilayer_lstm_cell_forward_padded.1} parent=19 // pred_fallthru
          _
        // Predicated region
        $region25: #{multilayer_lstm_cell_forward_padded.1} parent=19 // pred_check
          %p265 = pneg %p105
        $region26: #{multilayer_lstm_cell_forward_padded.1} parent=19 // pred_check_branch
          %267 = sbr.rel (%p265) target = $region28
        $region27: #{multilayer_lstm_cell_forward_padded.1} parent=19 // pred_region
          %s268 = sand.u32 %s26, 1
          %s269 = scalar_lea.sflag [#allocation8], %s268
          %s270 = sand.u32 %s95, 1
          %s271 = smul.addr %s270, 8
          %s272 = scalar_lea.vmem [#allocation9], %s271
          %s274 = ssub.s32 128, 128
          %275 = vsyncadd %s269, %s274
          %s276 = smul.addr %s33, 128
          %s277 = scalar_lea.hbm %s2, %s276
          %s279 = sshll.u32 %s272, 4
          %s280 = int_to_ptr.vmem [resolvable:$true] %s279
          %282 = dma.hbm_to_vmem [thread:$0]  %s277, 128, %s280, %s269
        $region28: #{multilayer_lstm_cell_forward_padded.1} parent=19 // pred_fallthru
          _
        // Predicated region
        $region29: #{multilayer_lstm_cell_forward_padded.1} parent=19 // pred_check
          %p283 = pneg %p133
        $region30: #{multilayer_lstm_cell_forward_padded.1} parent=19 // pred_check_branch
          %285 = sbr.rel (%p283) target = $region32
        $region31: #{multilayer_lstm_cell_forward_padded.1} parent=19 // pred_region
          %s286 = sand.u32 %s26, 1
          %s287 = scalar_lea.sflag [#allocation11], %s286
          %s288 = sand.u32 %s123, 1
          %s289 = smul.addr %s288, 1024
          %s290 = scalar_lea.vmem [#allocation10], %s289
          %s291 = smul.u32 32, %s34
          %s293 = ssub.s32 16384, 16384
          %294 = vsyncadd %s287, %s293
          %s295 = smul.addr %s291, 4
          %s296 = smul.addr %s33, 128
          %s297 = sadd.s32 %s295, %s296
          %s298 = smul.addr %s297, 128
          %s299 = scalar_lea.hbm %s3, %s298
          %s300 = sshll.u32 %s290, 4
          %s301 = int_to_ptr.vmem [resolvable:$true] %s300
          %306 = dma.hbm_to_vmem [thread:$0]  %s299, 16384, %s301, %s287, 512, 512, 32
        $region32: #{multilayer_lstm_cell_forward_padded.1} parent=19 // pred_fallthru
          _
        // Predicated region
        $region33: #{multilayer_lstm_cell_forward_padded.1} parent=19 // pred_check
          %p307 = pneg %p159
        $region34: #{multilayer_lstm_cell_forward_padded.1} parent=19 // pred_check_branch
          %309 = sbr.rel (%p307) target = $region36
        $region35: #{multilayer_lstm_cell_forward_padded.1} parent=19 // pred_region
          %s310 = sand.u32 %s26, 1
          %s311 = scalar_lea.sflag [#allocation11], %s310
          %s312 = sand.u32 %s149, 1
          %s313 = smul.addr %s312, 4
          %s314 = scalar_lea.vmem [#allocation12], %s313
          %s316 = ssub.s32 64, 64
          %317 = vsyncadd %s311, %s316
          %s318 = smul.addr %s33, 4
          %s319 = smul.addr %s318, 16
          %s320 = scalar_lea.hbm %s4, %s319
          %s322 = sshll.u32 %s314, 4
          %s323 = int_to_ptr.vmem [resolvable:$true] %s322
          %325 = dma.hbm_to_vmem [thread:$0]  %s320, 64, %s323, %s311
        $region36: #{multilayer_lstm_cell_forward_padded.1} parent=19 // pred_fallthru
          _
      $region20: #{multilayer_lstm_cell_forward_padded.1} parent=5 // pred_fallthru
        _
      %p326 = scmp.le.s32.totalorder 1, %s26
      %p327 = scmp.lt.s32.totalorder %s26, 4
      %p328 = pnand %p326, %p327
      %p329 = pneg %p328
      // Predicated region
      $region37: #{multilayer_lstm_cell_forward_padded.1} parent=5 // pred_check
        _
      $region38: #{multilayer_lstm_cell_forward_padded.1} parent=5 // pred_check_branch
        %331 = sbr.rel (%p328) target = $region40
      $region39: #{multilayer_lstm_cell_forward_padded.1} parent=5 // pred_region
        %s332 = ssub.s32 %s26, 1
        // Predicated region
        $region41: #{multilayer_lstm_cell_forward_padded.1} parent=39 // pred_check
          %p333 = pneg %p59
        $region42: #{multilayer_lstm_cell_forward_padded.1} parent=39 // pred_check_branch
          %335 = sbr.rel (%p333) target = $region44
        $region43: #{multilayer_lstm_cell_forward_padded.1} parent=39 // pred_region
          %336 = dma.done [#allocation5], 128
        $region44: #{multilayer_lstm_cell_forward_padded.1} parent=39 // pred_fallthru
          _
        %s337 = sand.u32 %s31, 1
        %s338 = scalar_lea.sflag [#allocation8], %s337
        %s339 = sand.u32 %s72, 1
        %s340 = smul.addr %s339, 8
        %s341 = scalar_lea.vmem [#allocation7], %s340
        // Predicated region
        $region45: #{multilayer_lstm_cell_forward_padded.1} parent=39 // pred_check
          %p342 = pneg %p85
        $region46: #{multilayer_lstm_cell_forward_padded.1} parent=39 // pred_check_branch
          %344 = sbr.rel (%p342) target = $region48
        $region47: #{multilayer_lstm_cell_forward_padded.1} parent=39 // pred_region
          %345 = dma.done %s338, 128
        $region48: #{multilayer_lstm_cell_forward_padded.1} parent=39 // pred_fallthru
          _
        %s346 = sand.u32 %s31, 1
        %s347 = scalar_lea.sflag [#allocation8], %s346
        %s348 = sand.u32 %s98, 1
        %s349 = smul.addr %s348, 8
        %s350 = scalar_lea.vmem [#allocation9], %s349
        // Predicated region
        $region49: #{multilayer_lstm_cell_forward_padded.1} parent=39 // pred_check
          %p351 = pneg %p111
        $region50: #{multilayer_lstm_cell_forward_padded.1} parent=39 // pred_check_branch
          %353 = sbr.rel (%p351) target = $region52
        $region51: #{multilayer_lstm_cell_forward_padded.1} parent=39 // pred_region
          %354 = dma.done %s347, 128
        $region52: #{multilayer_lstm_cell_forward_padded.1} parent=39 // pred_fallthru
          _
        %s355 = sand.u32 %s31, 1
        %s356 = scalar_lea.sflag [#allocation11], %s355
        %s357 = sand.u32 %s126, 1
        %s358 = smul.addr %s357, 1024
        %s359 = scalar_lea.vmem [#allocation10], %s358
        // Predicated region
        $region53: #{multilayer_lstm_cell_forward_padded.1} parent=39 // pred_check
          %p360 = pneg %p139
        $region54: #{multilayer_lstm_cell_forward_padded.1} parent=39 // pred_check_branch
          %362 = sbr.rel (%p360) target = $region56
        $region55: #{multilayer_lstm_cell_forward_padded.1} parent=39 // pred_region
          %363 = dma.done %s356, 16384
        $region56: #{multilayer_lstm_cell_forward_padded.1} parent=39 // pred_fallthru
          _
        %s364 = sand.u32 %s31, 1
        %s365 = scalar_lea.sflag [#allocation11], %s364
        %s366 = sand.u32 %s152, 1
        %s367 = smul.addr %s366, 4
        %s368 = scalar_lea.vmem [#allocation12], %s367
        // Predicated region
        $region57: #{multilayer_lstm_cell_forward_padded.1} parent=39 // pred_check
          %p369 = pneg %p165
        $region58: #{multilayer_lstm_cell_forward_padded.1} parent=39 // pred_check_branch
          %371 = sbr.rel (%p369) target = $region60
        $region59: #{multilayer_lstm_cell_forward_padded.1} parent=39 // pred_region
          %372 = dma.done %s365, 64
        $region60: #{multilayer_lstm_cell_forward_padded.1} parent=39 // pred_fallthru
          _
        %p373 = pneg %p59
        %p374 = pneg %p56
        %s375 = sand.u32 %s31, 1
        %s376 = scalar_lea.sflag [#allocation8], %s375
        %s377 = sand.u32 %s72, 1
        %s378 = smul.addr %s377, 8
        %s379 = scalar_lea.vmem [#allocation7], %s378
        %p380 = pneg %p85
        %p381 = pneg %p82
        %s382 = sand.u32 %s31, 1
        %s383 = scalar_lea.sflag [#allocation8], %s382
        %s384 = sand.u32 %s98, 1
        %s385 = smul.addr %s384, 8
        %s386 = scalar_lea.vmem [#allocation9], %s385
        %p387 = pneg %p111
        %p388 = pneg %p108
        %s389 = sand.u32 %s31, 1
        %s390 = scalar_lea.sflag [#allocation11], %s389
        %s391 = sand.u32 %s126, 1
        %s392 = smul.addr %s391, 1024
        %s393 = scalar_lea.vmem [#allocation10], %s392
        %p394 = pneg %p139
        %p395 = pneg %p136
        %s396 = sand.u32 %s31, 1
        %s397 = scalar_lea.sflag [#allocation11], %s396
        %s398 = sand.u32 %s152, 1
        %s399 = smul.addr %s398, 4
        %s400 = scalar_lea.vmem [#allocation12], %s399
        %p401 = pneg %p165
        %p402 = pneg %p162
        %p403 = pneg %p191
        %p404 = pneg %p188
        %s405 = sand.u32 %s178, 1
        %s406 = scalar_lea.sflag [#allocation6], %s405
        %s407 = sand.u32 %s178, 1
        %s408 = smul.addr %s407, 8
        %s409 = scalar_lea.vmem [#allocation13], %s408
        %p410 = pneg %p217
        %p411 = pneg %p214
        %s412 = sand.u32 %s204, 1
        %s413 = scalar_lea.sflag [#allocation15], %s412
        %s414 = sand.u32 %s204, 1
        %s415 = smul.addr %s414, 8
        %s416 = scalar_lea.vmem [#allocation14], %s415
        %s417 = smul.u32 32, %s36
        %p418 = scmp.eq.s32.totalorder %s35, 0
        %p419 = scmp.eq.s32.totalorder %s36, 0
        %p420 = pnand %p418, %p419
        %p421 = pneg %p420
        // Predicated region
        $region61: #{multilayer_lstm_cell_forward_padded.1} parent=39 // pred_check
          _
        $region62: #{multilayer_lstm_cell_forward_padded.1} parent=39 // pred_check_branch
          %423 = sbr.rel (%p420) target = $region64
        $region63: #{multilayer_lstm_cell_forward_padded.1} parent=39 // pred_region
          %v424 = vld [vmem:[#allocation4] sm:$0xff]
          %425 = vst [vmem:[#allocation2] sm:$0xff] %v424
        $region64: #{multilayer_lstm_cell_forward_padded.1} parent=39 // pred_fallthru
          _
        // Predicated region
        $region65: #{multilayer_lstm_cell_forward_padded.1} parent=39 // pred_check
          %p426 = pneg %p419
        $region66: #{multilayer_lstm_cell_forward_padded.1} parent=39 // pred_check_branch
          %428 = sbr.rel (%p426) target = $region68
        $region67: #{multilayer_lstm_cell_forward_padded.1} parent=39 // pred_region
          %v429 = vld [vmem:[%s341] sm:$0xff]
          %430 = vst [vmem:[#allocation2 + $0x8] sm:$0xff] %v429
        $region68: #{multilayer_lstm_cell_forward_padded.1} parent=39 // pred_fallthru
          _
        %s431 = smul.u32 %s36, 256
        %s432 = sshra.s32 %s431, 7
        %s433 = sand.u32 %s431, 127
        %s434 = smul.addr %s432, 8
        %s435 = scalar_lea.vmem [#allocation2], %s434
        %v436 = vld [vmem:[%s435] sm:$0xff]
        %v437 = vld [vmem:[%s435 + $0x8] sm:$0xff]
        %v438 = vld [vmem:[%s359] sm:$0xff]
        %v439 = vld [vmem:[%s359 + $0x8] sm:$0xff]
        %v440 = vld [vmem:[%s359 + $0x10] sm:$0xff]
        %v441 = vld [vmem:[%s359 + $0x18] sm:$0xff]
        %v442 = vld [vmem:[%s359 + $0x20] sm:$0xff]
        %v443 = vld [vmem:[%s359 + $0x28] sm:$0xff]
        %v444 = vld [vmem:[%s359 + $0x30] sm:$0xff]
        %v445 = vld [vmem:[%s359 + $0x38] sm:$0xff]
        %v446 = vld [vmem:[%s359 + $0x40] sm:$0xff]
        %v447 = vld [vmem:[%s359 + $0x48] sm:$0xff]
        %v448 = vld [vmem:[%s359 + $0x50] sm:$0xff]
        %v449 = vld [vmem:[%s359 + $0x58] sm:$0xff]
        %v450 = vld [vmem:[%s359 + $0x60] sm:$0xff]
        %v451 = vld [vmem:[%s359 + $0x68] sm:$0xff]
        %v452 = vld [vmem:[%s359 + $0x70] sm:$0xff]
        %v453 = vld [vmem:[%s359 + $0x78] sm:$0xff]
        %v454 = vld [vmem:[%s359 + $0x80] sm:$0xff]
        %v455 = vld [vmem:[%s359 + $0x88] sm:$0xff]
        %v456 = vld [vmem:[%s359 + $0x90] sm:$0xff]
        %v457 = vld [vmem:[%s359 + $0x98] sm:$0xff]
        %v458 = vld [vmem:[%s359 + $0xa0] sm:$0xff]
        %v459 = vld [vmem:[%s359 + $0xa8] sm:$0xff]
        %v460 = vld [vmem:[%s359 + $0xb0] sm:$0xff]
        %v461 = vld [vmem:[%s359 + $0xb8] sm:$0xff]
        %v462 = vld [vmem:[%s359 + $0xc0] sm:$0xff]
        %v463 = vld [vmem:[%s359 + $0xc8] sm:$0xff]
        %v464 = vld [vmem:[%s359 + $0xd0] sm:$0xff]
        %v465 = vld [vmem:[%s359 + $0xd8] sm:$0xff]
        %v466 = vld [vmem:[%s359 + $0xe0] sm:$0xff]
        %v467 = vld [vmem:[%s359 + $0xe8] sm:$0xff]
        %v468 = vld [vmem:[%s359 + $0xf0] sm:$0xff]
        %v469 = vld [vmem:[%s359 + $0xf8] sm:$0xff]
        %v470 = vld [vmem:[%s359 + $0x100] sm:$0xff]
        %v471 = vld [vmem:[%s359 + $0x108] sm:$0xff]
        %v472 = vld [vmem:[%s359 + $0x110] sm:$0xff]
        %v473 = vld [vmem:[%s359 + $0x118] sm:$0xff]
        %v474 = vld [vmem:[%s359 + $0x120] sm:$0xff]
        %v475 = vld [vmem:[%s359 + $0x128] sm:$0xff]
        %v476 = vld [vmem:[%s359 + $0x130] sm:$0xff]
        %v477 = vld [vmem:[%s359 + $0x138] sm:$0xff]
        %v478 = vld [vmem:[%s359 + $0x140] sm:$0xff]
        %v479 = vld [vmem:[%s359 + $0x148] sm:$0xff]
        %v480 = vld [vmem:[%s359 + $0x150] sm:$0xff]
        %v481 = vld [vmem:[%s359 + $0x158] sm:$0xff]
        %v482 = vld [vmem:[%s359 + $0x160] sm:$0xff]
        %v483 = vld [vmem:[%s359 + $0x168] sm:$0xff]
        %v484 = vld [vmem:[%s359 + $0x170] sm:$0xff]
        %v485 = vld [vmem:[%s359 + $0x178] sm:$0xff]
        %v486 = vld [vmem:[%s359 + $0x180] sm:$0xff]
        %v487 = vld [vmem:[%s359 + $0x188] sm:$0xff]
        %v488 = vld [vmem:[%s359 + $0x190] sm:$0xff]
        %v489 = vld [vmem:[%s359 + $0x198] sm:$0xff]
        %v490 = vld [vmem:[%s359 + $0x1a0] sm:$0xff]
        %v491 = vld [vmem:[%s359 + $0x1a8] sm:$0xff]
        %v492 = vld [vmem:[%s359 + $0x1b0] sm:$0xff]
        %v493 = vld [vmem:[%s359 + $0x1b8] sm:$0xff]
        %v494 = vld [vmem:[%s359 + $0x1c0] sm:$0xff]
        %v495 = vld [vmem:[%s359 + $0x1c8] sm:$0xff]
        %v496 = vld [vmem:[%s359 + $0x1d0] sm:$0xff]
        %v497 = vld [vmem:[%s359 + $0x1d8] sm:$0xff]
        %v498 = vld [vmem:[%s359 + $0x1e0] sm:$0xff]
        %v499 = vld [vmem:[%s359 + $0x1e8] sm:$0xff]
        %v500 = vld [vmem:[%s359 + $0x1f0] sm:$0xff]
        %v501 = vld [vmem:[%s359 + $0x1f8] sm:$0xff]
        %v502 = vld [vmem:[%s359 + $0x200] sm:$0xff]
        %v503 = vld [vmem:[%s359 + $0x208] sm:$0xff]
        %v504 = vld [vmem:[%s359 + $0x210] sm:$0xff]
        %v505 = vld [vmem:[%s359 + $0x218] sm:$0xff]
        %v506 = vld [vmem:[%s359 + $0x220] sm:$0xff]
        %v507 = vld [vmem:[%s359 + $0x228] sm:$0xff]
        %v508 = vld [vmem:[%s359 + $0x230] sm:$0xff]
        %v509 = vld [vmem:[%s359 + $0x238] sm:$0xff]
        %v510 = vld [vmem:[%s359 + $0x240] sm:$0xff]
        %v511 = vld [vmem:[%s359 + $0x248] sm:$0xff]
        %v512 = vld [vmem:[%s359 + $0x250] sm:$0xff]
        %v513 = vld [vmem:[%s359 + $0x258] sm:$0xff]
        %v514 = vld [vmem:[%s359 + $0x260] sm:$0xff]
        %v515 = vld [vmem:[%s359 + $0x268] sm:$0xff]
        %v516 = vld [vmem:[%s359 + $0x270] sm:$0xff]
        %v517 = vld [vmem:[%s359 + $0x278] sm:$0xff]
        %v518 = vld [vmem:[%s359 + $0x280] sm:$0xff]
        %v519 = vld [vmem:[%s359 + $0x288] sm:$0xff]
        %v520 = vld [vmem:[%s359 + $0x290] sm:$0xff]
        %v521 = vld [vmem:[%s359 + $0x298] sm:$0xff]
        %v522 = vld [vmem:[%s359 + $0x2a0] sm:$0xff]
        %v523 = vld [vmem:[%s359 + $0x2a8] sm:$0xff]
        %v524 = vld [vmem:[%s359 + $0x2b0] sm:$0xff]
        %v525 = vld [vmem:[%s359 + $0x2b8] sm:$0xff]
        %v526 = vld [vmem:[%s359 + $0x2c0] sm:$0xff]
        %v527 = vld [vmem:[%s359 + $0x2c8] sm:$0xff]
        %v528 = vld [vmem:[%s359 + $0x2d0] sm:$0xff]
        %v529 = vld [vmem:[%s359 + $0x2d8] sm:$0xff]
        %v530 = vld [vmem:[%s359 + $0x2e0] sm:$0xff]
        %v531 = vld [vmem:[%s359 + $0x2e8] sm:$0xff]
        %v532 = vld [vmem:[%s359 + $0x2f0] sm:$0xff]
        %v533 = vld [vmem:[%s359 + $0x2f8] sm:$0xff]
        %v534 = vld [vmem:[%s359 + $0x300] sm:$0xff]
        %v535 = vld [vmem:[%s359 + $0x308] sm:$0xff]
        %v536 = vld [vmem:[%s359 + $0x310] sm:$0xff]
        %v537 = vld [vmem:[%s359 + $0x318] sm:$0xff]
        %v538 = vld [vmem:[%s359 + $0x320] sm:$0xff]
        %v539 = vld [vmem:[%s359 + $0x328] sm:$0xff]
        %v540 = vld [vmem:[%s359 + $0x330] sm:$0xff]
        %v541 = vld [vmem:[%s359 + $0x338] sm:$0xff]
        %v542 = vld [vmem:[%s359 + $0x340] sm:$0xff]
        %v543 = vld [vmem:[%s359 + $0x348] sm:$0xff]
        %v544 = vld [vmem:[%s359 + $0x350] sm:$0xff]
        %v545 = vld [vmem:[%s359 + $0x358] sm:$0xff]
        %v546 = vld [vmem:[%s359 + $0x360] sm:$0xff]
        %v547 = vld [vmem:[%s359 + $0x368] sm:$0xff]
        %v548 = vld [vmem:[%s359 + $0x370] sm:$0xff]
        %v549 = vld [vmem:[%s359 + $0x378] sm:$0xff]
        %v550 = vld [vmem:[%s359 + $0x380] sm:$0xff]
        %v551 = vld [vmem:[%s359 + $0x388] sm:$0xff]
        %v552 = vld [vmem:[%s359 + $0x390] sm:$0xff]
        %v553 = vld [vmem:[%s359 + $0x398] sm:$0xff]
        %v554 = vld [vmem:[%s359 + $0x3a0] sm:$0xff]
        %v555 = vld [vmem:[%s359 + $0x3a8] sm:$0xff]
        %v556 = vld [vmem:[%s359 + $0x3b0] sm:$0xff]
        %v557 = vld [vmem:[%s359 + $0x3b8] sm:$0xff]
        %v558 = vld [vmem:[%s359 + $0x3c0] sm:$0xff]
        %v559 = vld [vmem:[%s359 + $0x3c8] sm:$0xff]
        %v560 = vld [vmem:[%s359 + $0x3d0] sm:$0xff]
        %v561 = vld [vmem:[%s359 + $0x3d8] sm:$0xff]
        %v562 = vld [vmem:[%s359 + $0x3e0] sm:$0xff]
        %v563 = vld [vmem:[%s359 + $0x3e8] sm:$0xff]
        %v564 = vld [vmem:[%s359 + $0x3f0] sm:$0xff]
        %v565 = vld [vmem:[%s359 + $0x3f8] sm:$0xff]
        %566 = vmatprep.subr.mxu0 %v499
        %567 = vmatpush1.msra.mxu0 %v498
        %568 = vmatprep.subr.mxu0 %v495
        %569 = vmatpush1.msra.mxu0 %v494
        %570 = vmatprep.subr.mxu0 %v491
        %571 = vmatpush1.msra.mxu0 %v490
        %572 = vmatprep.subr.mxu0 %v487
        %573 = vmatpush1.msra.mxu0 %v486
        %574 = vmatprep.subr.mxu0 %v483
        %575 = vmatpush1.msra.mxu0 %v482
        %576 = vmatprep.subr.mxu0 %v479
        %577 = vmatpush1.msra.mxu0 %v478
        %578 = vmatprep.subr.mxu0 %v475
        %579 = vmatpush1.msra.mxu0 %v474
        %580 = vmatprep.subr.mxu0 %v471
        %581 = vmatpush1.msra.mxu0 %v470
        %582 = vmatprep.subr.mxu0 %v467
        %583 = vmatpush1.msra.mxu0 %v466
        %584 = vmatprep.subr.mxu0 %v463
        %585 = vmatpush1.msra.mxu0 %v462
        %586 = vmatprep.subr.mxu0 %v459
        %587 = vmatpush1.msra.mxu0 %v458
        %588 = vmatprep.subr.mxu0 %v455
        %589 = vmatpush1.msra.mxu0 %v454
        %590 = vmatprep.subr.mxu0 %v451
        %591 = vmatpush1.msra.mxu0 %v450
        %592 = vmatprep.subr.mxu0 %v447
        %593 = vmatpush1.msra.mxu0 %v446
        %594 = vmatprep.subr.mxu0 %v443
        %595 = vmatpush1.msra.mxu0 %v442
        %596 = vmatprep.subr.mxu0 %v439
        %597 = vmatpush1.msra.mxu0 %v438
        %598 = vmatprep.subr.mxu0 %v563
        %599 = vmatpush2.msra.mxu0 %v562
        %600 = vmatprep.subr.mxu0 %v559
        %601 = vmatpush2.msra.mxu0 %v558
        %602 = vmatprep.subr.mxu0 %v555
        %603 = vmatpush2.msra.mxu0 %v554
        %604 = vmatprep.subr.mxu0 %v551
        %605 = vmatpush2.msra.mxu0 %v550
        %606 = vmatprep.subr.mxu0 %v547
        %607 = vmatpush2.msra.mxu0 %v546
        %608 = vmatprep.subr.mxu0 %v543
        %609 = vmatpush2.msra.mxu0 %v542
        %610 = vmatprep.subr.mxu0 %v539
        %611 = vmatpush2.msra.mxu0 %v538
        %612 = vmatprep.subr.mxu0 %v535
        %613 = vmatpush2.msra.mxu0 %v534
        %614 = vmatprep.subr.mxu0 %v531
        %615 = vmatpush2.msra.mxu0 %v530
        %616 = vmatprep.subr.mxu0 %v527
        %617 = vmatpush2.msra.mxu0 %v526
        %618 = vmatprep.subr.mxu0 %v523
        %619 = vmatpush2.msra.mxu0 %v522
        %620 = vmatprep.subr.mxu0 %v519
        %621 = vmatpush2.msra.mxu0 %v518
        %622 = vmatprep.subr.mxu0 %v515
        %623 = vmatpush2.msra.mxu0 %v514
        %624 = vmatprep.subr.mxu0 %v511
        %625 = vmatpush2.msra.mxu0 %v510
        %626 = vmatprep.subr.mxu0 %v507
        %627 = vmatpush2.msra.mxu0 %v506
        %628 = vmatprep.subr.mxu0 %v503
        %629 = vmatpush2.msra.mxu0 %v502
        %630 = vmatprep.mubr.f32.mxu0 %v437
        %631 = vmatmul.mubr.f32.gmra.mxu0 %v436
        %v632 = vpop.f32.mrf.mxu0
        %v633 = vadd.f32 0.0, %v632
        %v634 = vpop.f32.mrf.mxu0
        %v635 = vadd.f32 0.0, %v634
        %636 = vdwg.mxu0
        %637 = vmatprep.subr.mxu0 %v501
        %638 = vmatpush1.msra.mxu0 %v500
        %639 = vmatprep.subr.mxu0 %v497
        %640 = vmatpush1.msra.mxu0 %v496
        %641 = vmatprep.subr.mxu0 %v493
        %642 = vmatpush1.msra.mxu0 %v492
        %643 = vmatprep.subr.mxu0 %v489
        %644 = vmatpush1.msra.mxu0 %v488
        %645 = vmatprep.subr.mxu0 %v485
        %646 = vmatpush1.msra.mxu0 %v484
        %647 = vmatprep.subr.mxu0 %v481
        %648 = vmatpush1.msra.mxu0 %v480
        %649 = vmatprep.subr.mxu0 %v477
        %650 = vmatpush1.msra.mxu0 %v476
        %651 = vmatprep.subr.mxu0 %v473
        %652 = vmatpush1.msra.mxu0 %v472
        %653 = vmatprep.subr.mxu0 %v469
        %654 = vmatpush1.msra.mxu0 %v468
        %655 = vmatprep.subr.mxu0 %v465
        %656 = vmatpush1.msra.mxu0 %v464
        %657 = vmatprep.subr.mxu0 %v461
        %658 = vmatpush1.msra.mxu0 %v460
        %659 = vmatprep.subr.mxu0 %v457
        %660 = vmatpush1.msra.mxu0 %v456
        %661 = vmatprep.subr.mxu0 %v453
        %662 = vmatpush1.msra.mxu0 %v452
        %663 = vmatprep.subr.mxu0 %v449
        %664 = vmatpush1.msra.mxu0 %v448
        %665 = vmatprep.subr.mxu0 %v445
        %666 = vmatpush1.msra.mxu0 %v444
        %667 = vmatprep.subr.mxu0 %v441
        %668 = vmatpush1.msra.mxu0 %v440
        %669 = vmatprep.subr.mxu0 %v565
        %670 = vmatpush2.msra.mxu0 %v564
        %671 = vmatprep.subr.mxu0 %v561
        %672 = vmatpush2.msra.mxu0 %v560
        %673 = vmatprep.subr.mxu0 %v557
        %674 = vmatpush2.msra.mxu0 %v556
        %675 = vmatprep.subr.mxu0 %v553
        %676 = vmatpush2.msra.mxu0 %v552
        %677 = vmatprep.subr.mxu0 %v549
        %678 = vmatpush2.msra.mxu0 %v548
        %679 = vmatprep.subr.mxu0 %v545
        %680 = vmatpush2.msra.mxu0 %v544
        %681 = vmatprep.subr.mxu0 %v541
        %682 = vmatpush2.msra.mxu0 %v540
        %683 = vmatprep.subr.mxu0 %v537
        %684 = vmatpush2.msra.mxu0 %v536
        %685 = vmatprep.subr.mxu0 %v533
        %686 = vmatpush2.msra.mxu0 %v532
        %687 = vmatprep.subr.mxu0 %v529
        %688 = vmatpush2.msra.mxu0 %v528
        %689 = vmatprep.subr.mxu0 %v525
        %690 = vmatpush2.msra.mxu0 %v524
        %691 = vmatprep.subr.mxu0 %v521
        %692 = vmatpush2.msra.mxu0 %v520
        %693 = vmatprep.subr.mxu0 %v517
        %694 = vmatpush2.msra.mxu0 %v516
        %695 = vmatprep.subr.mxu0 %v513
        %696 = vmatpush2.msra.mxu0 %v512
        %697 = vmatprep.subr.mxu0 %v509
        %698 = vmatpush2.msra.mxu0 %v508
        %699 = vmatprep.subr.mxu0 %v505
        %700 = vmatpush2.msra.mxu0 %v504
        %701 = vmatprep.mubr.f32.mxu0 %v437
        %702 = vmatmul.mubr.f32.gmra.mxu0 %v436
        %v703 = vpop.f32.mrf.mxu0
        %v704 = vadd.f32 0.0, %v703
        %v705 = vpop.f32.mrf.mxu0
        %v706 = vadd.f32 0.0, %v705
        %707 = vdwg.mxu0
        // Predicated region
        $region69: #{multilayer_lstm_cell_forward_padded.1} parent=39 // pred_check
          %p708 = pneg %p419
        $region70: #{multilayer_lstm_cell_forward_padded.1} parent=39 // pred_check_branch
          %710 = sbr.rel (%p708) target = $region72
        $region71: #{multilayer_lstm_cell_forward_padded.1} parent=39 // pred_region
          %711 = vst [vmem:[#allocation3] sm:$0xff] %v633
          %712 = vst [vmem:[#allocation3 + $0x8] sm:$0xff] %v635
          %713 = vst [vmem:[#allocation3 + $0x10] sm:$0xff] %v704
          %714 = vst [vmem:[#allocation3 + $0x18] sm:$0xff] %v706
        $region72: #{multilayer_lstm_cell_forward_padded.1} parent=39 // pred_fallthru
          _
        %p715 = scmp.gt.s32.totalorder %s36, 0
        // Predicated region
        $region73: #{multilayer_lstm_cell_forward_padded.1} parent=39 // pred_check
          %p716 = pneg %p715
        $region74: #{multilayer_lstm_cell_forward_padded.1} parent=39 // pred_check_branch
          %718 = sbr.rel (%p716) target = $region76
        $region75: #{multilayer_lstm_cell_forward_padded.1} parent=39 // pred_region
          %v719 = vld [vmem:[#allocation3] sm:$0xff]
          %v720 = vld [vmem:[#allocation3 + $0x8] sm:$0xff]
          %v721 = vld [vmem:[#allocation3 + $0x10] sm:$0xff]
          %v722 = vld [vmem:[#allocation3 + $0x18] sm:$0xff]
          %v723 = vadd.f32 %v719, %v633
          %v724 = vadd.f32 %v720, %v635
          %v725 = vadd.f32 %v721, %v704
          %v726 = vadd.f32 %v722, %v706
          %727 = vst [vmem:[#allocation3] sm:$0xff] %v723
          %728 = vst [vmem:[#allocation3 + $0x8] sm:$0xff] %v724
          %729 = vst [vmem:[#allocation3 + $0x10] sm:$0xff] %v725
          %730 = vst [vmem:[#allocation3 + $0x18] sm:$0xff] %v726
        $region76: #{multilayer_lstm_cell_forward_padded.1} parent=39 // pred_fallthru
          _
        // Predicated region
        $region77: #{multilayer_lstm_cell_forward_padded.1} parent=39 // pred_check
          %p731 = pneg %p419
        $region78: #{multilayer_lstm_cell_forward_padded.1} parent=39 // pred_check_branch
          %733 = sbr.rel (%p731) target = $region80
        $region79: #{multilayer_lstm_cell_forward_padded.1} parent=39 // pred_region
          %v734 = vld [vmem:[#allocation3] sm:$0xff]
          %v735 = vld [vmem:[#allocation3 + $0x8] sm:$0xff]
          %v736 = vld [vmem:[#allocation3 + $0x10] sm:$0xff]
          %v737 = vld [vmem:[#allocation3 + $0x18] sm:$0xff]
          %v738 = vld [vmem:[%s368] sm:$0xf]
          %v740 = vlaneseq
          %v741 = vshrl.u32 %v740, 7
          %v742 = vsub.s32 0, %v741
          %v743 = vrot.slane %v738, %v742
          %v744 = vlaneseq
          %v745 = vshrl.u32 %v744, 7
          %v746 = vsub.s32 1, %v745
          %v747 = vrot.slane %v738, %v746
          %v748 = vlaneseq
          %v749 = vshrl.u32 %v748, 7
          %v750 = vsub.s32 2, %v749
          %v751 = vrot.slane %v738, %v750
          %v752 = vlaneseq
          %v753 = vshrl.u32 %v752, 7
          %v754 = vsub.s32 3, %v753
          %v755 = vrot.slane %v738, %v754
          %v760 = vadd.f32 %v734, %v743
          %v761 = vadd.f32 %v735, %v747
          %v762 = vadd.f32 %v736, %v751
          %v763 = vadd.f32 %v737, %v755
          %v764 = vxor.u32 %v760, 2147483648
          %v765 = vmul.f32 %v764, 1.442695
          %v766 = vpow.pop %v765
          %v767 = vadd.f32 %v766, 1.0
          %v768 = vrcp.pop %v767
          %v769 = vmul.f32 1.0, %v768
          %v770 = vxor.u32 %v761, 2147483648
          %v771 = vmul.f32 %v770, 1.442695
          %v772 = vpow.pop %v771
          %v773 = vadd.f32 %v772, 1.0
          %v774 = vrcp.pop %v773
          %v775 = vmul.f32 1.0, %v774
          %v776 = vtanh.pop %v762
          %v777 = vxor.u32 %v763, 2147483648
          %v778 = vmul.f32 %v777, 1.442695
          %v779 = vpow.pop %v778
          %v780 = vadd.f32 %v779, 1.0
          %v781 = vrcp.pop %v780
          %v782 = vmul.f32 1.0, %v781
          %v783 = vld [vmem:[%s350] sm:$0xff]
          %v784 = vmul.f32 %v775, %v783
          %v785 = vmul.f32 %v769, %v776
          %v786 = vadd.f32 %v784, %v785
          %v787 = vtanh.pop %v786
          %v788 = vmul.f32 %v782, %v787
          %789 = vst [vmem:[%s409] sm:$0xff] %v788
          %790 = vst [vmem:[%s416] sm:$0xff] %v786
          %791 = vst [vmem:[#allocation2] sm:$0xff] %v788
        $region80: #{multilayer_lstm_cell_forward_padded.1} parent=39 // pred_fallthru
          _
        %s792 = sand.u32 %s178, 1
        %s793 = scalar_lea.sflag [#allocation6], %s792
        %s794 = sand.u32 %s178, 1
        %s795 = smul.addr %s794, 8
        %s796 = scalar_lea.vmem [#allocation13], %s795
        %s797 = sand.u32 %s204, 1
        %s798 = scalar_lea.sflag [#allocation15], %s797
        %s799 = sand.u32 %s204, 1
        %s800 = smul.addr %s799, 8
        %s801 = scalar_lea.vmem [#allocation14], %s800
        // Predicated region
        $region81: #{multilayer_lstm_cell_forward_padded.1} parent=39 // pred_check
          %p802 = pneg %p188
        $region82: #{multilayer_lstm_cell_forward_padded.1} parent=39 // pred_check_branch
          %804 = sbr.rel (%p802) target = $region84
        $region83: #{multilayer_lstm_cell_forward_padded.1} parent=39 // pred_region
          %s806 = ssub.s32 128, 128
          %807 = vsyncadd %s793, %s806
          %s808 = smul.addr %s35, 128
          %s809 = scalar_lea.hbm %s5, %s808
          %s811 = sshll.u32 %s796, 4
          %s812 = int_to_ptr.vmem [resolvable:$true] %s811
          %814 = dma.vmem_to_hbm [thread:$0]  %s812, 128, %s809, %s793
        $region84: #{multilayer_lstm_cell_forward_padded.1} parent=39 // pred_fallthru
          _
        // Predicated region
        $region85: #{multilayer_lstm_cell_forward_padded.1} parent=39 // pred_check
          %p815 = pneg %p214
        $region86: #{multilayer_lstm_cell_forward_padded.1} parent=39 // pred_check_branch
          %817 = sbr.rel (%p815) target = $region88
        $region87: #{multilayer_lstm_cell_forward_padded.1} parent=39 // pred_region
          %s819 = ssub.s32 128, 128
          %820 = vsyncadd %s798, %s819
          %s821 = smul.addr %s35, 128
          %s822 = scalar_lea.hbm %s6, %s821
          %s824 = sshll.u32 %s801, 4
          %s825 = int_to_ptr.vmem [resolvable:$true] %s824
          %827 = dma.vmem_to_hbm [thread:$0]  %s825, 128, %s822, %s798
        $region88: #{multilayer_lstm_cell_forward_padded.1} parent=39 // pred_fallthru
          _
      $region40: #{multilayer_lstm_cell_forward_padded.1} parent=5 // pred_fallthru
        _
      %p828 = scmp.le.s32.totalorder 2, %s26
      // Predicated region
      $region89: #{multilayer_lstm_cell_forward_padded.1} parent=5 // pred_check
        %p829 = pneg %p828
      $region90: #{multilayer_lstm_cell_forward_padded.1} parent=5 // pred_check_branch
        %831 = sbr.rel (%p829) target = $region92
      $region91: #{multilayer_lstm_cell_forward_padded.1} parent=5 // pred_region
        %s832 = ssub.s32 %s26, 2
        // Predicated region
        $region93: #{multilayer_lstm_cell_forward_padded.1} parent=91 // pred_check
          %p833 = pneg %p194
        $region94: #{multilayer_lstm_cell_forward_padded.1} parent=91 // pred_check_branch
          %835 = sbr.rel (%p833) target = $region96
        $region95: #{multilayer_lstm_cell_forward_padded.1} parent=91 // pred_region
          %s836 = sand.u32 %s179, 1
          %s837 = scalar_lea.sflag [#allocation6], %s836
          %s838 = sand.u32 %s179, 1
          %s839 = smul.addr %s838, 8
          %s840 = scalar_lea.vmem [#allocation13], %s839
          %841 = dma.done %s837, 128
        $region96: #{multilayer_lstm_cell_forward_padded.1} parent=91 // pred_fallthru
          _
        // Predicated region
        $region97: #{multilayer_lstm_cell_forward_padded.1} parent=91 // pred_check
          %p842 = pneg %p220
        $region98: #{multilayer_lstm_cell_forward_padded.1} parent=91 // pred_check_branch
          %844 = sbr.rel (%p842) target = $region100
        $region99: #{multilayer_lstm_cell_forward_padded.1} parent=91 // pred_region
          %s845 = sand.u32 %s205, 1
          %s846 = scalar_lea.sflag [#allocation15], %s845
          %s847 = sand.u32 %s205, 1
          %s848 = smul.addr %s847, 8
          %s849 = scalar_lea.vmem [#allocation14], %s848
          %850 = dma.done %s846, 128
        $region100: #{multilayer_lstm_cell_forward_padded.1} parent=91 // pred_fallthru
          _
      $region92: #{multilayer_lstm_cell_forward_padded.1} parent=5 // pred_fallthru
        _
    $region6: #{multilayer_lstm_cell_forward_padded.1} parent=1 // loop_footer
      %s30 = sadd.s32 1, %s26
    $region7: #{multilayer_lstm_cell_forward_padded.1} parent=1 // loop_footer_branch
      %25 = sbr.rel target = $region3
    $region8: #{multilayer_lstm_cell_forward_padded.1} parent=1 // loop_exit
      _
    %851 = vsyncpa [#allocation5], 1
    %s852 = scalar_lea.sflag [#allocation5], 1
    %853 = vsyncpa %s852, 1
    %854 = vsyncpa [#allocation8], 1
    %s855 = scalar_lea.sflag [#allocation8], 1
    %856 = vsyncpa %s855, 1
    %857 = vsyncpa [#allocation11], 1
    %s858 = scalar_lea.sflag [#allocation11], 1
    %859 = vsyncpa %s858, 1
    %860 = vsyncpa [#allocation6], 1
    %s861 = scalar_lea.sflag [#allocation6], 1
    %862 = vsyncpa %s861, 1
    %863 = vsyncpa [#allocation15], 1
    %s864 = scalar_lea.sflag [#allocation15], 1
    %865 = vsyncpa %s864, 1

</llo_original>
